<compile_context>
chip_gen: v7x
topology: tpu7x:2x2x1
jax: 0.10.0
libtpu: 0.0.40
codegen_flags: <defaults>
</compile_context>

<pallas_src>
import functools

import jax
import jax.numpy as jnp
from jax import lax
from jax.experimental import pallas as pl
from jax.experimental.pallas import tpu as pltpu


def _text_classifier_kernel(x_ref, w_ref, b_ref, o_ref, *, chunk, num_chunks):
    # x_ref: (TB, D) VMEM tile of the batch (double-buffered by BlockSpec)
    # w_ref: (1, D)  VMEM resident weight row
    # b_ref: (1,)    SMEM scalar bias
    # o_ref: (TB, 1) VMEM output tile (ragged rows masked on writeback)
    w = w_ref[...].astype(jnp.float32)          # (1, D): sublane-broadcast in the mul
    b = b_ref[0]

    def body(c, carry):
        r0 = pl.multiple_of(c * chunk, chunk)
        x = x_ref[pl.ds(r0, chunk), :].astype(jnp.float32)        # (chunk, D)  VPU
        logits = jnp.sum(x * w, axis=-1, keepdims=True) + b       # (chunk, 1)  XLU
        o_ref[pl.ds(r0, chunk), :] = jax.nn.sigmoid(logits).astype(o_ref.dtype)  # EUP
        return carry

    if num_chunks == 1:
        body(0, 0)
    else:
        lax.fori_loop(0, num_chunks, body, 0, unroll=min(num_chunks, 8))


def text_classifier_forward(x, weight, bias, *, block_batch=None):
    """x: [B, D] f32; weight: [1, D] f32 (PyTorch nn.Linear layout); bias: [1] f32.
    Returns sigmoid(x @ weight.T + bias) with torch-style .squeeze()."""
    B, D = x.shape
    x = x.astype(jnp.float32)
    w_row = weight.reshape(1, D).astype(jnp.float32)    # lane-dense weight row
    b_vec = bias.reshape(1,).astype(jnp.float32)        # SMEM scalar

    bytes_per_row = D * 4

    # --- Inner compute chunk (rows per mul+reduce): 8..256 sublanes, ~64 KiB of
    # --- f32 product live at once -> no vreg spills even for large TB.
    chunk = max(8, min(256, ((64 * 1024) // bytes_per_row) // 8 * 8))
    chunk = min(chunk, max(8, (-(-B // 8)) * 8))        # no bigger than round_up(B, 8)

    # --- Batch tile (DMA granularity), sized by bytes -----------------------
    if block_batch is None:
        target_tile_bytes = 8 * 1024 * 1024             # multi-MiB tile: ~85%+ roofline
        tb = max(chunk, target_tile_bytes // bytes_per_row)
        # Keep >= ~8 grid steps for large B so the "parallel" axis shards across
        # v7x's two TensorCores (and the pipeline has work to overlap).
        min_steps = 8
        if B >= min_steps * chunk:
            tb = min(tb, -(-B // min_steps))
        # Double-buffered x stream must fit the scoped-VMEM budget on every chip
        # (v7x has only 64 MiB physical VMEM per TC).
        vmem_x_budget = 40 * 1024 * 1024
        tb = min(tb, vmem_x_budget // (2 * bytes_per_row))
    else:
        tb = block_batch
    tb = max(chunk, (tb // chunk) * chunk)              # multiple of the compute chunk
    tb = min(tb, (-(-B // chunk)) * chunk)              # at most one ragged pass over B
    num_chunks = tb // chunk

    grid = (pl.cdiv(B, tb),)                            # NO padding: ragged last block

    # Explicit scoped-VMEM limit: enough for 2x double-buffered x tiles + weight
    # + output, capped at 48 MiB (safe on v7x's 64 MiB physical VMEM).
    vmem_limit = min(48 * 1024 * 1024,
                     2 * tb * bytes_per_row + 2 * tb * 4 + 2 * D * 4 + (4 << 20))

    kernel = functools.partial(_text_classifier_kernel,
                               chunk=chunk, num_chunks=num_chunks)

    out = pl.pallas_call(
        kernel,
        out_shape=jax.ShapeDtypeStruct((B, 1), jnp.float32),
        grid=grid,
        in_specs=[
            pl.BlockSpec((tb, D), lambda i: (i, 0)),            # streamed x tiles
            pl.BlockSpec((1, D), lambda i: (0, 0)),             # resident weight row
            pl.BlockSpec(memory_space=pltpu.MemorySpace.SMEM),  # scalar bias
        ],
        out_specs=pl.BlockSpec((tb, 1), lambda i: (i, 0)),
        compiler_params=pltpu.CompilerParams(
            dimension_semantics=("parallel",),      # shard batch tiles across v7x's 2 TCs
            vmem_limit_bytes=int(vmem_limit),
        ),
    )(x, w_row, b_vec)

    # torch .squeeze(): (B, 1) -> (B,), and (1, 1) -> scalar.
    return jnp.squeeze(out)


if __name__ == "__main__":
    key = jax.random.PRNGKey(0)
    kx, kw, kb = jax.random.split(key, 3)

    batch, input_dim = 300, 128
    x = jax.random.normal(kx, (batch, input_dim), dtype=jnp.float32)

    # PyTorch Linear default init: U(-1/sqrt(D), 1/sqrt(D))
    bound = 1.0 / jnp.sqrt(jnp.float32(input_dim))
    weight = jax.random.uniform(kw, (1, input_dim), minval=-bound, maxval=bound,
                                dtype=jnp.float32)
    bias = jax.random.uniform(kb, (1,), minval=-bound, maxval=bound,
                              dtype=jnp.float32)

    ref = jnp.squeeze(jax.nn.sigmoid(x @ weight.T + bias))

    # Auto-sized path: single ragged tile (384-row block over 300 rows, 3 chunks).
    y_auto = text_classifier_forward(x, weight, bias)
    jax.block_until_ready(y_auto)
    assert y_auto.shape == (batch,)
    assert jnp.allclose(y_auto, ref, atol=1e-5, rtol=1e-5)

    # Forced multi-tile path: grid of 3, last block ragged (44 of 128 rows valid).
    y_multi = text_classifier_forward(x, weight, bias, block_batch=128)
    jax.block_until_ready(y_multi)
    assert y_multi.shape == (batch,)
    assert jnp.allclose(y_multi, ref, atol=1e-5, rtol=1e-5)

    # B == 1 path: torch's .squeeze() collapses (1, 1) to a 0-d scalar.
    x1 = x[:1]
    y1 = text_classifier_forward(x1, weight, bias)
    jax.block_until_ready(y1)
    ref1 = jnp.squeeze(jax.nn.sigmoid(x1 @ weight.T + bias))
    assert y1.shape == ()
    assert jnp.allclose(y1, ref1, atol=1e-5, rtol=1e-5)

    print("KERNEL_OK")
</pallas_src>

<mosaic_0001>
module attributes {stable_mosaic.version = 11 : i64} {
  func.func @_text_classifier_kernel(%arg0: i32, %arg1: memref<384x128xf32, #tpu.memory_space<vmem>>, %arg2: memref<1x128xf32, #tpu.memory_space<vmem>>, %arg3: memref<1xf32, #tpu.memory_space<smem>>, %arg4: memref<384x1xf32, #tpu.memory_space<vmem>>) attributes {dimension_semantics = [#tpu.dimension_semantics<parallel>], iteration_bounds = array<i64: 1>, scalar_prefetch = 0 : i64, scratch_operands = 0 : i64, tpu.core_type = #tpu.core_type<tc>, window_params = [{transform_indices = @transform_0, window_bounds = array<i64: 384, 128>}, {pipeline_mode = #tpu.pipeline_mode<synchronous>, transform_indices = @transform_1, window_bounds = array<i64: 1, 128>}, {transform_indices = @transform_2, window_bounds = array<i64: 1>}, {transform_indices = @transform_3, window_bounds = array<i64: 384, 1>}]} {
    %c0 = arith.constant 0 : index
    %c0_0 = arith.constant 0 : index
    %0 = vector.load %arg2[%c0, %c0_0] : memref<1x128xf32, #tpu.memory_space<vmem>>, vector<1x128xf32>
    %c0_1 = arith.constant 0 : index
    %1 = memref.load %arg3[%c0_1] : memref<1xf32, #tpu.memory_space<smem>>
    %c0_i32 = arith.constant 0 : i32
    %c128_i32 = arith.constant 128 : i32
    %2 = arith.muli %c0_i32, %c128_i32 : i32
    %3 = tpu.assume_multiple %2, 128 : i32
    %4 = arith.index_cast %3 : i32 to index
    %c0_2 = arith.constant 0 : index
    %5 = vector.load %arg1[%4, %c0_2] : memref<384x128xf32, #tpu.memory_space<vmem>>, vector<128x128xf32>
    %6 = vector.broadcast %0 : vector<1x128xf32> to vector<128x128xf32>
    %7 = arith.mulf %5, %6 : vector<128x128xf32>
    %cst = arith.constant dense<0.000000e+00> : vector<128xf32>
    %8 = vector.multi_reduction <add>, %7, %cst [1] : vector<128x128xf32> to vector<128xf32>
    %9 = vector.shape_cast %8 : vector<128xf32> to vector<128x1xf32>
    %10 = vector.broadcast %1 : f32 to vector<128x1xf32>
    %11 = arith.addf %9, %10 : vector<128x1xf32>
    %12 = arith.negf %11 : vector<128x1xf32>
    %13 = math.exp %12 : vector<128x1xf32>
    %cst_3 = arith.constant 1.000000e+00 : f32
    %14 = vector.broadcast %cst_3 : f32 to vector<128x1xf32>
    %15 = arith.addf %14, %13 : vector<128x1xf32>
    %16 = arith.divf %14, %15 : vector<128x1xf32>
    %17 = arith.index_cast %3 : i32 to index
    %c0_4 = arith.constant 0 : index
    %18 = vector.load %arg4[%17, %c0_4] : memref<384x1xf32, #tpu.memory_space<vmem>>, vector<128x1xf32>
    tpu.vector_store %arg4[%17, %c0_4], %16 {strides = array<i32>} : memref<384x1xf32, #tpu.memory_space<vmem>>, vector<128x1xf32>,
    %c1_i32 = arith.constant 1 : i32
    %c128_i32_5 = arith.constant 128 : i32
    %19 = arith.muli %c1_i32, %c128_i32_5 : i32
    %20 = tpu.assume_multiple %19, 128 : i32
    %21 = arith.index_cast %20 : i32 to index
    %c0_6 = arith.constant 0 : index
    %22 = vector.load %arg1[%21, %c0_6] : memref<384x128xf32, #tpu.memory_space<vmem>>, vector<128x128xf32>
    %23 = vector.broadcast %0 : vector<1x128xf32> to vector<128x128xf32>
    %24 = arith.mulf %22, %23 : vector<128x128xf32>
    %cst_7 = arith.constant dense<0.000000e+00> : vector<128xf32>
    %25 = vector.multi_reduction <add>, %24, %cst_7 [1] : vector<128x128xf32> to vector<128xf32>
    %26 = vector.shape_cast %25 : vector<128xf32> to vector<128x1xf32>
    %27 = vector.broadcast %1 : f32 to vector<128x1xf32>
    %28 = arith.addf %26, %27 : vector<128x1xf32>
    %29 = arith.negf %28 : vector<128x1xf32>
    %30 = math.exp %29 : vector<128x1xf32>
    %cst_8 = arith.constant 1.000000e+00 : f32
    %31 = vector.broadcast %cst_8 : f32 to vector<128x1xf32>
    %32 = arith.addf %31, %30 : vector<128x1xf32>
    %33 = arith.divf %31, %32 : vector<128x1xf32>
    %34 = arith.index_cast %20 : i32 to index
    %c0_9 = arith.constant 0 : index
    %35 = vector.load %arg4[%34, %c0_9] : memref<384x1xf32, #tpu.memory_space<vmem>>, vector<128x1xf32>
    tpu.vector_store %arg4[%34, %c0_9], %33 {strides = array<i32>} : memref<384x1xf32, #tpu.memory_space<vmem>>, vector<128x1xf32>,
    %c2_i32 = arith.constant 2 : i32
    %c128_i32_10 = arith.constant 128 : i32
    %36 = arith.muli %c2_i32, %c128_i32_10 : i32
    %37 = tpu.assume_multiple %36, 128 : i32
    %38 = arith.index_cast %37 : i32 to index
    %c0_11 = arith.constant 0 : index
    %39 = vector.load %arg1[%38, %c0_11] : memref<384x128xf32, #tpu.memory_space<vmem>>, vector<128x128xf32>
    %40 = vector.broadcast %0 : vector<1x128xf32> to vector<128x128xf32>
    %41 = arith.mulf %39, %40 : vector<128x128xf32>
    %cst_12 = arith.constant dense<0.000000e+00> : vector<128xf32>
    %42 = vector.multi_reduction <add>, %41, %cst_12 [1] : vector<128x128xf32> to vector<128xf32>
    %43 = vector.shape_cast %42 : vector<128xf32> to vector<128x1xf32>
    %44 = vector.broadcast %1 : f32 to vector<128x1xf32>
    %45 = arith.addf %43, %44 : vector<128x1xf32>
    %46 = arith.negf %45 : vector<128x1xf32>
    %47 = math.exp %46 : vector<128x1xf32>
    %cst_13 = arith.constant 1.000000e+00 : f32
    %48 = vector.broadcast %cst_13 : f32 to vector<128x1xf32>
    %49 = arith.addf %48, %47 : vector<128x1xf32>
    %50 = arith.divf %48, %49 : vector<128x1xf32>
    %51 = arith.index_cast %37 : i32 to index
    %c0_14 = arith.constant 0 : index
    %52 = vector.load %arg4[%51, %c0_14] : memref<384x1xf32, #tpu.memory_space<vmem>>, vector<128x1xf32>
    tpu.vector_store %arg4[%51, %c0_14], %50 {strides = array<i32>} : memref<384x1xf32, #tpu.memory_space<vmem>>, vector<128x1xf32>,
    %c3_i32 = arith.constant 3 : i32
    return
  }
  func.func @transform_0(%arg0: i32) -> (i32, i32) {
    %c0_i32 = arith.constant 0 : i32
    %c0_i32_0 = arith.constant 0 : i32
    return %arg0, %c0_i32 : i32, i32
  }
  func.func @transform_1(%arg0: i32) -> (i32, i32) {
    %c0_i32 = arith.constant 0 : i32
    %c0_i32_0 = arith.constant 0 : i32
    %c0_i32_1 = arith.constant 0 : i32
    return %c0_i32, %c0_i32_0 : i32, i32
  }
  func.func @transform_2(%arg0: i32) -> i32 {
    %c0_i32 = arith.constant 0 : i32
    %c0_i32_0 = arith.constant 0 : i32
    return %c0_i32 : i32
  }
  func.func @transform_3(%arg0: i32) -> (i32, i32) {
    %c0_i32 = arith.constant 0 : i32
    %c0_i32_0 = arith.constant 0 : i32
    return %arg0, %c0_i32 : i32, i32
  }
}

</mosaic_0001>

<llo_original>
// kernel: tpu_custom_call.1
$region0: #{tpu_custom_call.1}
  #allocation0 [shape = 'u32[]', space=smem, size = 0x4, offset = 0x4, fixed_abs, tag = 'smem constant byte address 0x4 - core index']
  #allocation1 [shape = 'u32[144,128]{1,0:T(1,128)}', space=vmem, size = 0x12000, scoped, tag = 'internal scratch']
  #allocation2 [shape = 'f32[1]{0:T(128)S(6)}', space=smem, size = 0x200, scoped, tag = 'scoped memory for tpu_custom_call.1']
  %s0 = inlined_call_operand.hbm [shape: f32[300,128], index: 0, kind: input, shape index: {}]
  %s1 = inlined_call_operand.vmem [shape: f32[1,128], index: 1, kind: input, shape index: {}]
  %s2 = inlined_call_operand.<no memory space> [shape: f32[1], index: 2, kind: input, shape index: {}]
  %s3 = inlined_call_operand.vmem [shape: f32[300,1], index: 3, kind: output, shape index: {}]
  %s4 = sld [smem:[#allocation0]]
  $region60: #{tpu_custom_call.1} parent=0
    _
  %s6 = ssub.s32 1, %s4
  %s7 = scalar_select 0, %s6, %s4
  %8 = sst [smem:[#allocation2]] %s2
  $region1: #{tpu_custom_call.1} parent=0
    #allocation3 [shape = 'u8[196608]{0}', space=vmem, size = 0x30000, scoped, tag = 'input window, operand 0, single buffered']
    #allocation4 [shape = 's32[1]{0}', space=sflag, size = 0x4, scoped, tag = 'scoped memory for tpu_custom_call.1']
    #allocation5 [shape = 'u8[196608]{0}', space=vmem, size = 0x30000, scoped, tag = 'output window, operand 0, single buffered']
    %9 = vsyncpa [#allocation4], 0
    // Predicated region
    $region2: #{tpu_custom_call.1} parent=1 // pred_check
      _
    $region3: #{tpu_custom_call.1} parent=1 // pred_check_branch
      %11 = sbr.rel (0) target = $region5
    $region4: #{tpu_custom_call.1} parent=1 // pred_region
      %s13 = ssub.s32 6144, 4864
      %14 = vsyncadd [#allocation4], %s13
      %s15 = sshll.u32 [#allocation3], 4
      %s16 = int_to_ptr.vmem [resolvable:$true] %s15
      %21 = dma.hbm_to_vmem [thread:$0]  %s0, 4864, %s16, [#allocation4], 128, 128, 8
    $region5: #{tpu_custom_call.1} parent=1 // pred_fallthru
      _
    // Predicated region
    $region6: #{tpu_custom_call.1} parent=1 // pred_check
      _
    $region7: #{tpu_custom_call.1} parent=1 // pred_check_branch
      %23 = sbr.rel (0) target = $region9
    $region8: #{tpu_custom_call.1} parent=1 // pred_region
      _
    $region9: #{tpu_custom_call.1} parent=1 // pred_fallthru
      _
    // Predicated region
    $region10: #{tpu_custom_call.1} parent=1 // pred_check
      _
    $region11: #{tpu_custom_call.1} parent=1 // pred_check_branch
      %25 = sbr.rel (0) target = $region13
    $region12: #{tpu_custom_call.1} parent=1 // pred_region
      _
    $region13: #{tpu_custom_call.1} parent=1 // pred_fallthru
      _
    // Predicated region
    $region14: #{tpu_custom_call.1} parent=1 // pred_check
      _
    $region15: #{tpu_custom_call.1} parent=1 // pred_check_branch
      %27 = sbr.rel (0) target = $region17
    $region16: #{tpu_custom_call.1} parent=1 // pred_region
      %28 = dma.done [#allocation4], 6144
    $region17: #{tpu_custom_call.1} parent=1 // pred_fallthru
      _
    %v29 = vld [vmem:[%s1] sm:$0x1]
    %s30 = sld [smem:[#allocation2]]
    %v31 = vld [vmem:[#allocation3] sm:$0xff]
    %v32 = vld [vmem:[#allocation3 + $0x8] sm:$0xff]
    %v33 = vld [vmem:[#allocation3 + $0x10] sm:$0xff]
    %v34 = vld [vmem:[#allocation3 + $0x18] sm:$0xff]
    %v35 = vld [vmem:[#allocation3 + $0x20] sm:$0xff]
    %v36 = vld [vmem:[#allocation3 + $0x28] sm:$0xff]
    %v37 = vld [vmem:[#allocation3 + $0x30] sm:$0xff]
    %v38 = vld [vmem:[#allocation3 + $0x38] sm:$0xff]
    %v39 = vld [vmem:[#allocation3 + $0x40] sm:$0xff]
    %v40 = vld [vmem:[#allocation3 + $0x48] sm:$0xff]
    %v41 = vld [vmem:[#allocation3 + $0x50] sm:$0xff]
    %v42 = vld [vmem:[#allocation3 + $0x58] sm:$0xff]
    %v43 = vld [vmem:[#allocation3 + $0x60] sm:$0xff]
    %v44 = vld [vmem:[#allocation3 + $0x68] sm:$0xff]
    %v45 = vld [vmem:[#allocation3 + $0x70] sm:$0xff]
    %v46 = vld [vmem:[#allocation3 + $0x78] sm:$0xff]
    %v48 = vlaneseq
    %v49 = vshrl.u32 %v48, 7
    %v50 = vsub.s32 0, %v49
    %v51 = vrot.slane %v29, %v50
    %v53 = vmul.f32 %v31, %v51
    %v54 = vmul.f32 %v32, %v51
    %v55 = vmul.f32 %v33, %v51
    %v56 = vmul.f32 %v34, %v51
    %v57 = vmul.f32 %v35, %v51
    %v58 = vmul.f32 %v36, %v51
    %v59 = vmul.f32 %v37, %v51
    %v60 = vmul.f32 %v38, %v51
    %v61 = vmul.f32 %v39, %v51
    %v62 = vmul.f32 %v40, %v51
    %v63 = vmul.f32 %v41, %v51
    %v64 = vmul.f32 %v42, %v51
    %v65 = vmul.f32 %v43, %v51
    %v66 = vmul.f32 %v44, %v51
    %v67 = vmul.f32 %v45, %v51
    %v68 = vmul.f32 %v46, %v51
    %69 = vadd.xlane.f32.xlu0 %v53
    %v70 = vpop.xlane.xlu0 %69
    %71 = vadd.xlane.f32.xlu0 %v54
    %v72 = vpop.xlane.xlu0 %71
    %73 = vadd.xlane.f32.xlu0 %v55
    %v74 = vpop.xlane.xlu0 %73
    %75 = vadd.xlane.f32.xlu0 %v56
    %v76 = vpop.xlane.xlu0 %75
    %77 = vadd.xlane.f32.xlu0 %v57
    %v78 = vpop.xlane.xlu0 %77
    %79 = vadd.xlane.f32.xlu0 %v58
    %v80 = vpop.xlane.xlu0 %79
    %81 = vadd.xlane.f32.xlu0 %v59
    %v82 = vpop.xlane.xlu0 %81
    %83 = vadd.xlane.f32.xlu0 %v60
    %v84 = vpop.xlane.xlu0 %83
    %85 = vadd.xlane.f32.xlu0 %v61
    %v86 = vpop.xlane.xlu0 %85
    %87 = vadd.xlane.f32.xlu0 %v62
    %v88 = vpop.xlane.xlu0 %87
    %89 = vadd.xlane.f32.xlu0 %v63
    %v90 = vpop.xlane.xlu0 %89
    %91 = vadd.xlane.f32.xlu0 %v64
    %v92 = vpop.xlane.xlu0 %91
    %93 = vadd.xlane.f32.xlu0 %v65
    %v94 = vpop.xlane.xlu0 %93
    %95 = vadd.xlane.f32.xlu0 %v66
    %v96 = vpop.xlane.xlu0 %95
    %97 = vadd.xlane.f32.xlu0 %v67
    %v98 = vpop.xlane.xlu0 %97
    %99 = vadd.xlane.f32.xlu0 %v68
    %v100 = vpop.xlane.xlu0 %99
    %v101 = vstv %s30
    %v102 = vadd.f32 %v70, %v101
    %v103 = vadd.f32 %v72, %v101
    %v104 = vadd.f32 %v74, %v101
    %v105 = vadd.f32 %v76, %v101
    %v106 = vadd.f32 %v78, %v101
    %v107 = vadd.f32 %v80, %v101
    %v108 = vadd.f32 %v82, %v101
    %v109 = vadd.f32 %v84, %v101
    %v110 = vadd.f32 %v86, %v101
    %v111 = vadd.f32 %v88, %v101
    %v112 = vadd.f32 %v90, %v101
    %v113 = vadd.f32 %v92, %v101
    %v114 = vadd.f32 %v94, %v101
    %v115 = vadd.f32 %v96, %v101
    %v116 = vadd.f32 %v98, %v101
    %v117 = vadd.f32 %v100, %v101
    %v118 = vxor.u32 %v102, 2147483648
    %v119 = vxor.u32 %v103, 2147483648
    %v120 = vxor.u32 %v104, 2147483648
    %v121 = vxor.u32 %v105, 2147483648
    %v122 = vxor.u32 %v106, 2147483648
    %v123 = vxor.u32 %v107, 2147483648
    %v124 = vxor.u32 %v108, 2147483648
    %v125 = vxor.u32 %v109, 2147483648
    %v126 = vxor.u32 %v110, 2147483648
    %v127 = vxor.u32 %v111, 2147483648
    %v128 = vxor.u32 %v112, 2147483648
    %v129 = vxor.u32 %v113, 2147483648
    %v130 = vxor.u32 %v114, 2147483648
    %v131 = vxor.u32 %v115, 2147483648
    %v132 = vxor.u32 %v116, 2147483648
    %v133 = vxor.u32 %v117, 2147483648
    %v134 = vmul.f32 %v118, 1.442695
    %v135 = vpow.pop %v134
    %v136 = vmul.f32 %v119, 1.442695
    %v137 = vpow.pop %v136
    %v138 = vmul.f32 %v120, 1.442695
    %v139 = vpow.pop %v138
    %v140 = vmul.f32 %v121, 1.442695
    %v141 = vpow.pop %v140
    %v142 = vmul.f32 %v122, 1.442695
    %v143 = vpow.pop %v142
    %v144 = vmul.f32 %v123, 1.442695
    %v145 = vpow.pop %v144
    %v146 = vmul.f32 %v124, 1.442695
    %v147 = vpow.pop %v146
    %v148 = vmul.f32 %v125, 1.442695
    %v149 = vpow.pop %v148
    %v150 = vmul.f32 %v126, 1.442695
    %v151 = vpow.pop %v150
    %v152 = vmul.f32 %v127, 1.442695
    %v153 = vpow.pop %v152
    %v154 = vmul.f32 %v128, 1.442695
    %v155 = vpow.pop %v154
    %v156 = vmul.f32 %v129, 1.442695
    %v157 = vpow.pop %v156
    %v158 = vmul.f32 %v130, 1.442695
    %v159 = vpow.pop %v158
    %v160 = vmul.f32 %v131, 1.442695
    %v161 = vpow.pop %v160
    %v162 = vmul.f32 %v132, 1.442695
    %v163 = vpow.pop %v162
    %v164 = vmul.f32 %v133, 1.442695
    %v165 = vpow.pop %v164
    %v166 = vadd.f32 %v135, 1.0
    %v167 = vadd.f32 %v137, 1.0
    %v168 = vadd.f32 %v139, 1.0
    %v169 = vadd.f32 %v141, 1.0
    %v170 = vadd.f32 %v143, 1.0
    %v171 = vadd.f32 %v145, 1.0
    %v172 = vadd.f32 %v147, 1.0
    %v173 = vadd.f32 %v149, 1.0
    %v174 = vadd.f32 %v151, 1.0
    %v175 = vadd.f32 %v153, 1.0
    %v176 = vadd.f32 %v155, 1.0
    %v177 = vadd.f32 %v157, 1.0
    %v178 = vadd.f32 %v159, 1.0
    %v179 = vadd.f32 %v161, 1.0
    %v180 = vadd.f32 %v163, 1.0
    %v181 = vadd.f32 %v165, 1.0
    %v182 = vrcp.pop %v166
    %v183 = vmul.f32 1.0, %v182
    %v184 = vrcp.pop %v167
    %v185 = vmul.f32 1.0, %v184
    %v186 = vrcp.pop %v168
    %v187 = vmul.f32 1.0, %v186
    %v188 = vrcp.pop %v169
    %v189 = vmul.f32 1.0, %v188
    %v190 = vrcp.pop %v170
    %v191 = vmul.f32 1.0, %v190
    %v192 = vrcp.pop %v171
    %v193 = vmul.f32 1.0, %v192
    %v194 = vrcp.pop %v172
    %v195 = vmul.f32 1.0, %v194
    %v196 = vrcp.pop %v173
    %v197 = vmul.f32 1.0, %v196
    %v198 = vrcp.pop %v174
    %v199 = vmul.f32 1.0, %v198
    %v200 = vrcp.pop %v175
    %v201 = vmul.f32 1.0, %v200
    %v202 = vrcp.pop %v176
    %v203 = vmul.f32 1.0, %v202
    %v204 = vrcp.pop %v177
    %v205 = vmul.f32 1.0, %v204
    %v206 = vrcp.pop %v178
    %v207 = vmul.f32 1.0, %v206
    %v208 = vrcp.pop %v179
    %v209 = vmul.f32 1.0, %v208
    %v210 = vrcp.pop %v180
    %v211 = vmul.f32 1.0, %v210
    %v212 = vrcp.pop %v181
    %v213 = vmul.f32 1.0, %v212
    %vm214 = vcmask 7168
    %215 = vst.msk [vmem:[#allocation5] sm:$0xff] %vm214, %v183
    %216 = vst.msk [vmem:[#allocation5 + $0x8] sm:$0xff] %vm214, %v185
    %217 = vst.msk [vmem:[#allocation5 + $0x10] sm:$0xff] %vm214, %v187
    %218 = vst.msk [vmem:[#allocation5 + $0x18] sm:$0xff] %vm214, %v189
    %219 = vst.msk [vmem:[#allocation5 + $0x20] sm:$0xff] %vm214, %v191
    %220 = vst.msk [vmem:[#allocation5 + $0x28] sm:$0xff] %vm214, %v193
    %221 = vst.msk [vmem:[#allocation5 + $0x30] sm:$0xff] %vm214, %v195
    %222 = vst.msk [vmem:[#allocation5 + $0x38] sm:$0xff] %vm214, %v197
    %223 = vst.msk [vmem:[#allocation5 + $0x40] sm:$0xff] %vm214, %v199
    %224 = vst.msk [vmem:[#allocation5 + $0x48] sm:$0xff] %vm214, %v201
    %225 = vst.msk [vmem:[#allocation5 + $0x50] sm:$0xff] %vm214, %v203
    %226 = vst.msk [vmem:[#allocation5 + $0x58] sm:$0xff] %vm214, %v205
    %227 = vst.msk [vmem:[#allocation5 + $0x60] sm:$0xff] %vm214, %v207
    %228 = vst.msk [vmem:[#allocation5 + $0x68] sm:$0xff] %vm214, %v209
    %229 = vst.msk [vmem:[#allocation5 + $0x70] sm:$0xff] %vm214, %v211
    %230 = vst.msk [vmem:[#allocation5 + $0x78] sm:$0xff] %vm214, %v213
    %s231 = scalar_lea.vmem [#allocation3], 128
    %v232 = vld [vmem:[%s231] sm:$0xff]
    %v233 = vld [vmem:[%s231 + $0x8] sm:$0xff]
    %v234 = vld [vmem:[%s231 + $0x10] sm:$0xff]
    %v235 = vld [vmem:[%s231 + $0x18] sm:$0xff]
    %v236 = vld [vmem:[%s231 + $0x20] sm:$0xff]
    %v237 = vld [vmem:[%s231 + $0x28] sm:$0xff]
    %v238 = vld [vmem:[%s231 + $0x30] sm:$0xff]
    %v239 = vld [vmem:[%s231 + $0x38] sm:$0xff]
    %v240 = vld [vmem:[%s231 + $0x40] sm:$0xff]
    %v241 = vld [vmem:[%s231 + $0x48] sm:$0xff]
    %v242 = vld [vmem:[%s231 + $0x50] sm:$0xff]
    %v243 = vld [vmem:[%s231 + $0x58] sm:$0xff]
    %v244 = vld [vmem:[%s231 + $0x60] sm:$0xff]
    %v245 = vld [vmem:[%s231 + $0x68] sm:$0xff]
    %v246 = vld [vmem:[%s231 + $0x70] sm:$0xff]
    %v247 = vld [vmem:[%s231 + $0x78] sm:$0xff]
    %v248 = vmul.f32 %v232, %v51
    %v249 = vmul.f32 %v233, %v51
    %v250 = vmul.f32 %v234, %v51
    %v251 = vmul.f32 %v235, %v51
    %v252 = vmul.f32 %v236, %v51
    %v253 = vmul.f32 %v237, %v51
    %v254 = vmul.f32 %v238, %v51
    %v255 = vmul.f32 %v239, %v51
    %v256 = vmul.f32 %v240, %v51
    %v257 = vmul.f32 %v241, %v51
    %v258 = vmul.f32 %v242, %v51
    %v259 = vmul.f32 %v243, %v51
    %v260 = vmul.f32 %v244, %v51
    %v261 = vmul.f32 %v245, %v51
    %v262 = vmul.f32 %v246, %v51
    %v263 = vmul.f32 %v247, %v51
    %264 = vadd.xlane.f32.xlu0 %v248
    %v265 = vpop.xlane.xlu0 %264
    %266 = vadd.xlane.f32.xlu0 %v249
    %v267 = vpop.xlane.xlu0 %266
    %268 = vadd.xlane.f32.xlu0 %v250
    %v269 = vpop.xlane.xlu0 %268
    %270 = vadd.xlane.f32.xlu0 %v251
    %v271 = vpop.xlane.xlu0 %270
    %272 = vadd.xlane.f32.xlu0 %v252
    %v273 = vpop.xlane.xlu0 %272
    %274 = vadd.xlane.f32.xlu0 %v253
    %v275 = vpop.xlane.xlu0 %274
    %276 = vadd.xlane.f32.xlu0 %v254
    %v277 = vpop.xlane.xlu0 %276
    %278 = vadd.xlane.f32.xlu0 %v255
    %v279 = vpop.xlane.xlu0 %278
    %280 = vadd.xlane.f32.xlu0 %v256
    %v281 = vpop.xlane.xlu0 %280
    %282 = vadd.xlane.f32.xlu0 %v257
    %v283 = vpop.xlane.xlu0 %282
    %284 = vadd.xlane.f32.xlu0 %v258
    %v285 = vpop.xlane.xlu0 %284
    %286 = vadd.xlane.f32.xlu0 %v259
    %v287 = vpop.xlane.xlu0 %286
    %288 = vadd.xlane.f32.xlu0 %v260
    %v289 = vpop.xlane.xlu0 %288
    %290 = vadd.xlane.f32.xlu0 %v261
    %v291 = vpop.xlane.xlu0 %290
    %292 = vadd.xlane.f32.xlu0 %v262
    %v293 = vpop.xlane.xlu0 %292
    %294 = vadd.xlane.f32.xlu0 %v263
    %v295 = vpop.xlane.xlu0 %294
    %v296 = vadd.f32 %v265, %v101
    %v297 = vadd.f32 %v267, %v101
    %v298 = vadd.f32 %v269, %v101
    %v299 = vadd.f32 %v271, %v101
    %v300 = vadd.f32 %v273, %v101
    %v301 = vadd.f32 %v275, %v101
    %v302 = vadd.f32 %v277, %v101
    %v303 = vadd.f32 %v279, %v101
    %v304 = vadd.f32 %v281, %v101
    %v305 = vadd.f32 %v283, %v101
    %v306 = vadd.f32 %v285, %v101
    %v307 = vadd.f32 %v287, %v101
    %v308 = vadd.f32 %v289, %v101
    %v309 = vadd.f32 %v291, %v101
    %v310 = vadd.f32 %v293, %v101
    %v311 = vadd.f32 %v295, %v101
    %v312 = vxor.u32 %v296, 2147483648
    %v313 = vxor.u32 %v297, 2147483648
    %v314 = vxor.u32 %v298, 2147483648
    %v315 = vxor.u32 %v299, 2147483648
    %v316 = vxor.u32 %v300, 2147483648
    %v317 = vxor.u32 %v301, 2147483648
    %v318 = vxor.u32 %v302, 2147483648
    %v319 = vxor.u32 %v303, 2147483648
    %v320 = vxor.u32 %v304, 2147483648
    %v321 = vxor.u32 %v305, 2147483648
    %v322 = vxor.u32 %v306, 2147483648
    %v323 = vxor.u32 %v307, 2147483648
    %v324 = vxor.u32 %v308, 2147483648
    %v325 = vxor.u32 %v309, 2147483648
    %v326 = vxor.u32 %v310, 2147483648
    %v327 = vxor.u32 %v311, 2147483648
    %v328 = vmul.f32 %v312, 1.442695
    %v329 = vpow.pop %v328
    %v330 = vmul.f32 %v313, 1.442695
    %v331 = vpow.pop %v330
    %v332 = vmul.f32 %v314, 1.442695
    %v333 = vpow.pop %v332
    %v334 = vmul.f32 %v315, 1.442695
    %v335 = vpow.pop %v334
    %v336 = vmul.f32 %v316, 1.442695
    %v337 = vpow.pop %v336
    %v338 = vmul.f32 %v317, 1.442695
    %v339 = vpow.pop %v338
    %v340 = vmul.f32 %v318, 1.442695
    %v341 = vpow.pop %v340
    %v342 = vmul.f32 %v319, 1.442695
    %v343 = vpow.pop %v342
    %v344 = vmul.f32 %v320, 1.442695
    %v345 = vpow.pop %v344
    %v346 = vmul.f32 %v321, 1.442695
    %v347 = vpow.pop %v346
    %v348 = vmul.f32 %v322, 1.442695
    %v349 = vpow.pop %v348
    %v350 = vmul.f32 %v323, 1.442695
    %v351 = vpow.pop %v350
    %v352 = vmul.f32 %v324, 1.442695
    %v353 = vpow.pop %v352
    %v354 = vmul.f32 %v325, 1.442695
    %v355 = vpow.pop %v354
    %v356 = vmul.f32 %v326, 1.442695
    %v357 = vpow.pop %v356
    %v358 = vmul.f32 %v327, 1.442695
    %v359 = vpow.pop %v358
    %v360 = vadd.f32 %v329, 1.0
    %v361 = vadd.f32 %v331, 1.0
    %v362 = vadd.f32 %v333, 1.0
    %v363 = vadd.f32 %v335, 1.0
    %v364 = vadd.f32 %v337, 1.0
    %v365 = vadd.f32 %v339, 1.0
    %v366 = vadd.f32 %v341, 1.0
    %v367 = vadd.f32 %v343, 1.0
    %v368 = vadd.f32 %v345, 1.0
    %v369 = vadd.f32 %v347, 1.0
    %v370 = vadd.f32 %v349, 1.0
    %v371 = vadd.f32 %v351, 1.0
    %v372 = vadd.f32 %v353, 1.0
    %v373 = vadd.f32 %v355, 1.0
    %v374 = vadd.f32 %v357, 1.0
    %v375 = vadd.f32 %v359, 1.0
    %v376 = vrcp.pop %v360
    %v377 = vmul.f32 1.0, %v376
    %v378 = vrcp.pop %v361
    %v379 = vmul.f32 1.0, %v378
    %v380 = vrcp.pop %v362
    %v381 = vmul.f32 1.0, %v380
    %v382 = vrcp.pop %v363
    %v383 = vmul.f32 1.0, %v382
    %v384 = vrcp.pop %v364
    %v385 = vmul.f32 1.0, %v384
    %v386 = vrcp.pop %v365
    %v387 = vmul.f32 1.0, %v386
    %v388 = vrcp.pop %v366
    %v389 = vmul.f32 1.0, %v388
    %v390 = vrcp.pop %v367
    %v391 = vmul.f32 1.0, %v390
    %v392 = vrcp.pop %v368
    %v393 = vmul.f32 1.0, %v392
    %v394 = vrcp.pop %v369
    %v395 = vmul.f32 1.0, %v394
    %v396 = vrcp.pop %v370
    %v397 = vmul.f32 1.0, %v396
    %v398 = vrcp.pop %v371
    %v399 = vmul.f32 1.0, %v398
    %v400 = vrcp.pop %v372
    %v401 = vmul.f32 1.0, %v400
    %v402 = vrcp.pop %v373
    %v403 = vmul.f32 1.0, %v402
    %v404 = vrcp.pop %v374
    %v405 = vmul.f32 1.0, %v404
    %v406 = vrcp.pop %v375
    %v407 = vmul.f32 1.0, %v406
    %s408 = scalar_lea.vmem [#allocation5], 128
    %409 = vst.msk [vmem:[%s408] sm:$0xff] %vm214, %v377
    %410 = vst.msk [vmem:[%s408 + $0x8] sm:$0xff] %vm214, %v379
    %411 = vst.msk [vmem:[%s408 + $0x10] sm:$0xff] %vm214, %v381
    %412 = vst.msk [vmem:[%s408 + $0x18] sm:$0xff] %vm214, %v383
    %413 = vst.msk [vmem:[%s408 + $0x20] sm:$0xff] %vm214, %v385
    %414 = vst.msk [vmem:[%s408 + $0x28] sm:$0xff] %vm214, %v387
    %415 = vst.msk [vmem:[%s408 + $0x30] sm:$0xff] %vm214, %v389
    %416 = vst.msk [vmem:[%s408 + $0x38] sm:$0xff] %vm214, %v391
    %417 = vst.msk [vmem:[%s408 + $0x40] sm:$0xff] %vm214, %v393
    %418 = vst.msk [vmem:[%s408 + $0x48] sm:$0xff] %vm214, %v395
    %419 = vst.msk [vmem:[%s408 + $0x50] sm:$0xff] %vm214, %v397
    %420 = vst.msk [vmem:[%s408 + $0x58] sm:$0xff] %vm214, %v399
    %421 = vst.msk [vmem:[%s408 + $0x60] sm:$0xff] %vm214, %v401
    %422 = vst.msk [vmem:[%s408 + $0x68] sm:$0xff] %vm214, %v403
    %423 = vst.msk [vmem:[%s408 + $0x70] sm:$0xff] %vm214, %v405
    %424 = vst.msk [vmem:[%s408 + $0x78] sm:$0xff] %vm214, %v407
    %s425 = scalar_lea.vmem [#allocation3], 256
    %v426 = vld [vmem:[%s425] sm:$0xff]
    %v427 = vld [vmem:[%s425 + $0x8] sm:$0xff]
    %v428 = vld [vmem:[%s425 + $0x10] sm:$0xff]
    %v429 = vld [vmem:[%s425 + $0x18] sm:$0xff]
    %v430 = vld [vmem:[%s425 + $0x20] sm:$0xff]
    %v431 = vld [vmem:[%s425 + $0x28] sm:$0xff]
    %v432 = vld [vmem:[%s425 + $0x30] sm:$0xff]
    %v433 = vld [vmem:[%s425 + $0x38] sm:$0xff]
    %v434 = vld [vmem:[%s425 + $0x40] sm:$0xff]
    %v435 = vld [vmem:[%s425 + $0x48] sm:$0xff]
    %v436 = vld [vmem:[%s425 + $0x50] sm:$0xff]
    %v437 = vld [vmem:[%s425 + $0x58] sm:$0xff]
    %v438 = vld [vmem:[%s425 + $0x60] sm:$0xff]
    %v439 = vld [vmem:[%s425 + $0x68] sm:$0xff]
    %v440 = vld [vmem:[%s425 + $0x70] sm:$0xff]
    %v441 = vld [vmem:[%s425 + $0x78] sm:$0xff]
    %v442 = vmul.f32 %v426, %v51
    %v443 = vmul.f32 %v427, %v51
    %v444 = vmul.f32 %v428, %v51
    %v445 = vmul.f32 %v429, %v51
    %v446 = vmul.f32 %v430, %v51
    %v447 = vmul.f32 %v431, %v51
    %v448 = vmul.f32 %v432, %v51
    %v449 = vmul.f32 %v433, %v51
    %v450 = vmul.f32 %v434, %v51
    %v451 = vmul.f32 %v435, %v51
    %v452 = vmul.f32 %v436, %v51
    %v453 = vmul.f32 %v437, %v51
    %v454 = vmul.f32 %v438, %v51
    %v455 = vmul.f32 %v439, %v51
    %v456 = vmul.f32 %v440, %v51
    %v457 = vmul.f32 %v441, %v51
    %458 = vadd.xlane.f32.xlu0 %v442
    %v459 = vpop.xlane.xlu0 %458
    %460 = vadd.xlane.f32.xlu0 %v443
    %v461 = vpop.xlane.xlu0 %460
    %462 = vadd.xlane.f32.xlu0 %v444
    %v463 = vpop.xlane.xlu0 %462
    %464 = vadd.xlane.f32.xlu0 %v445
    %v465 = vpop.xlane.xlu0 %464
    %466 = vadd.xlane.f32.xlu0 %v446
    %v467 = vpop.xlane.xlu0 %466
    %468 = vadd.xlane.f32.xlu0 %v447
    %v469 = vpop.xlane.xlu0 %468
    %470 = vadd.xlane.f32.xlu0 %v448
    %v471 = vpop.xlane.xlu0 %470
    %472 = vadd.xlane.f32.xlu0 %v449
    %v473 = vpop.xlane.xlu0 %472
    %474 = vadd.xlane.f32.xlu0 %v450
    %v475 = vpop.xlane.xlu0 %474
    %476 = vadd.xlane.f32.xlu0 %v451
    %v477 = vpop.xlane.xlu0 %476
    %478 = vadd.xlane.f32.xlu0 %v452
    %v479 = vpop.xlane.xlu0 %478
    %480 = vadd.xlane.f32.xlu0 %v453
    %v481 = vpop.xlane.xlu0 %480
    %482 = vadd.xlane.f32.xlu0 %v454
    %v483 = vpop.xlane.xlu0 %482
    %484 = vadd.xlane.f32.xlu0 %v455
    %v485 = vpop.xlane.xlu0 %484
    %486 = vadd.xlane.f32.xlu0 %v456
    %v487 = vpop.xlane.xlu0 %486
    %488 = vadd.xlane.f32.xlu0 %v457
    %v489 = vpop.xlane.xlu0 %488
    %v490 = vadd.f32 %v459, %v101
    %v491 = vadd.f32 %v461, %v101
    %v492 = vadd.f32 %v463, %v101
    %v493 = vadd.f32 %v465, %v101
    %v494 = vadd.f32 %v467, %v101
    %v495 = vadd.f32 %v469, %v101
    %v496 = vadd.f32 %v471, %v101
    %v497 = vadd.f32 %v473, %v101
    %v498 = vadd.f32 %v475, %v101
    %v499 = vadd.f32 %v477, %v101
    %v500 = vadd.f32 %v479, %v101
    %v501 = vadd.f32 %v481, %v101
    %v502 = vadd.f32 %v483, %v101
    %v503 = vadd.f32 %v485, %v101
    %v504 = vadd.f32 %v487, %v101
    %v505 = vadd.f32 %v489, %v101
    %v506 = vxor.u32 %v490, 2147483648
    %v507 = vxor.u32 %v491, 2147483648
    %v508 = vxor.u32 %v492, 2147483648
    %v509 = vxor.u32 %v493, 2147483648
    %v510 = vxor.u32 %v494, 2147483648
    %v511 = vxor.u32 %v495, 2147483648
    %v512 = vxor.u32 %v496, 2147483648
    %v513 = vxor.u32 %v497, 2147483648
    %v514 = vxor.u32 %v498, 2147483648
    %v515 = vxor.u32 %v499, 2147483648
    %v516 = vxor.u32 %v500, 2147483648
    %v517 = vxor.u32 %v501, 2147483648
    %v518 = vxor.u32 %v502, 2147483648
    %v519 = vxor.u32 %v503, 2147483648
    %v520 = vxor.u32 %v504, 2147483648
    %v521 = vxor.u32 %v505, 2147483648
    %v522 = vmul.f32 %v506, 1.442695
    %v523 = vpow.pop %v522
    %v524 = vmul.f32 %v507, 1.442695
    %v525 = vpow.pop %v524
    %v526 = vmul.f32 %v508, 1.442695
    %v527 = vpow.pop %v526
    %v528 = vmul.f32 %v509, 1.442695
    %v529 = vpow.pop %v528
    %v530 = vmul.f32 %v510, 1.442695
    %v531 = vpow.pop %v530
    %v532 = vmul.f32 %v511, 1.442695
    %v533 = vpow.pop %v532
    %v534 = vmul.f32 %v512, 1.442695
    %v535 = vpow.pop %v534
    %v536 = vmul.f32 %v513, 1.442695
    %v537 = vpow.pop %v536
    %v538 = vmul.f32 %v514, 1.442695
    %v539 = vpow.pop %v538
    %v540 = vmul.f32 %v515, 1.442695
    %v541 = vpow.pop %v540
    %v542 = vmul.f32 %v516, 1.442695
    %v543 = vpow.pop %v542
    %v544 = vmul.f32 %v517, 1.442695
    %v545 = vpow.pop %v544
    %v546 = vmul.f32 %v518, 1.442695
    %v547 = vpow.pop %v546
    %v548 = vmul.f32 %v519, 1.442695
    %v549 = vpow.pop %v548
    %v550 = vmul.f32 %v520, 1.442695
    %v551 = vpow.pop %v550
    %v552 = vmul.f32 %v521, 1.442695
    %v553 = vpow.pop %v552
    %v554 = vadd.f32 %v523, 1.0
    %v555 = vadd.f32 %v525, 1.0
    %v556 = vadd.f32 %v527, 1.0
    %v557 = vadd.f32 %v529, 1.0
    %v558 = vadd.f32 %v531, 1.0
    %v559 = vadd.f32 %v533, 1.0
    %v560 = vadd.f32 %v535, 1.0
    %v561 = vadd.f32 %v537, 1.0
    %v562 = vadd.f32 %v539, 1.0
    %v563 = vadd.f32 %v541, 1.0
    %v564 = vadd.f32 %v543, 1.0
    %v565 = vadd.f32 %v545, 1.0
    %v566 = vadd.f32 %v547, 1.0
    %v567 = vadd.f32 %v549, 1.0
    %v568 = vadd.f32 %v551, 1.0
    %v569 = vadd.f32 %v553, 1.0
    %v570 = vrcp.pop %v554
    %v571 = vmul.f32 1.0, %v570
    %v572 = vrcp.pop %v555
    %v573 = vmul.f32 1.0, %v572
    %v574 = vrcp.pop %v556
    %v575 = vmul.f32 1.0, %v574
    %v576 = vrcp.pop %v557
    %v577 = vmul.f32 1.0, %v576
    %v578 = vrcp.pop %v558
    %v579 = vmul.f32 1.0, %v578
    %v580 = vrcp.pop %v559
    %v581 = vmul.f32 1.0, %v580
    %v582 = vrcp.pop %v560
    %v583 = vmul.f32 1.0, %v582
    %v584 = vrcp.pop %v561
    %v585 = vmul.f32 1.0, %v584
    %v586 = vrcp.pop %v562
    %v587 = vmul.f32 1.0, %v586
    %v588 = vrcp.pop %v563
    %v589 = vmul.f32 1.0, %v588
    %v590 = vrcp.pop %v564
    %v591 = vmul.f32 1.0, %v590
    %v592 = vrcp.pop %v565
    %v593 = vmul.f32 1.0, %v592
    %v594 = vrcp.pop %v566
    %v595 = vmul.f32 1.0, %v594
    %v596 = vrcp.pop %v567
    %v597 = vmul.f32 1.0, %v596
    %v598 = vrcp.pop %v568
    %v599 = vmul.f32 1.0, %v598
    %v600 = vrcp.pop %v569
    %v601 = vmul.f32 1.0, %v600
    %s602 = scalar_lea.vmem [#allocation5], 256
    %603 = vst.msk [vmem:[%s602] sm:$0xff] %vm214, %v571
    %604 = vst.msk [vmem:[%s602 + $0x8] sm:$0xff] %vm214, %v573
    %605 = vst.msk [vmem:[%s602 + $0x10] sm:$0xff] %vm214, %v575
    %606 = vst.msk [vmem:[%s602 + $0x18] sm:$0xff] %vm214, %v577
    %607 = vst.msk [vmem:[%s602 + $0x20] sm:$0xff] %vm214, %v579
    %608 = vst.msk [vmem:[%s602 + $0x28] sm:$0xff] %vm214, %v581
    %609 = vst.msk [vmem:[%s602 + $0x30] sm:$0xff] %vm214, %v583
    %610 = vst.msk [vmem:[%s602 + $0x38] sm:$0xff] %vm214, %v585
    %611 = vst.msk [vmem:[%s602 + $0x40] sm:$0xff] %vm214, %v587
    %612 = vst.msk [vmem:[%s602 + $0x48] sm:$0xff] %vm214, %v589
    %613 = vst.msk [vmem:[%s602 + $0x50] sm:$0xff] %vm214, %v591
    %614 = vst.msk [vmem:[%s602 + $0x58] sm:$0xff] %vm214, %v593
    %615 = vst.msk [vmem:[%s602 + $0x60] sm:$0xff] %vm214, %v595
    %616 = vst.msk [vmem:[%s602 + $0x68] sm:$0xff] %vm214, %v597
    %617 = vst.msk [vmem:[%s602 + $0x70] sm:$0xff] %vm214, %v599
    %618 = vst.msk [vmem:[%s602 + $0x78] sm:$0xff] %vm214, %v601
    // Predicated region
    $region18: #{tpu_custom_call.1} parent=1 // pred_check
      _
    $region19: #{tpu_custom_call.1} parent=1 // pred_check_branch
      %620 = sbr.rel (0) target = $region21
    $region20: #{tpu_custom_call.1} parent=1 // pred_region
      // Predicated region
      $region22: #{tpu_custom_call.1} parent=20 // pred_check
        _
      $region23: #{tpu_custom_call.1} parent=20 // pred_check_branch
        %622 = sbr.rel (0) target = $region25
      $region24: #{tpu_custom_call.1} parent=20 // pred_region
        // Predicated region
        $region26: #{tpu_custom_call.1} parent=24 // pred_check
          _
        $region27: #{tpu_custom_call.1} parent=24 // pred_check_branch
          %624 = sbr.rel (0) target = $region29
        $region28: #{tpu_custom_call.1} parent=24 // pred_region
          // Predicated region
          $region41: #{tpu_custom_call.1} parent=28 // pred_check
            _
          $region42: #{tpu_custom_call.1} parent=28 // pred_check_branch
            %713 = sbr.rel (0) target = $region44
          $region43: #{tpu_custom_call.1} parent=28 // pred_region
            loop: start=0, step=1, limit=1
            $region45: #{tpu_custom_call.1} parent=43 // loop_pre_header
              _
            $region46: #{tpu_custom_call.1} parent=43 // loop_header
              %s715 = sphi 0, %s719
              %p716 = scmp.ge.s32.totalorder %s715, 1
              %s720 = sphi [#allocation5], [#allocation5]
              %s721 = sphi %s3, %s3
            $region47: #{tpu_custom_call.1} parent=43 // loop_header_branch
              %718 = sbr.rel (%p716) target = $region51
            $region48: #{tpu_custom_call.1} parent=43 // loop_body
              %v722 = vld [vmem:[%s720] sm:$0xff]
              %723 = vst [vmem:[%s721] sm:$0xff] %v722
              %v724 = vld [vmem:[%s720 + $0x8] sm:$0xff]
              %725 = vst [vmem:[%s721 + $0x8] sm:$0xff] %v724
              %v726 = vld [vmem:[%s720 + $0x10] sm:$0xff]
              %727 = vst [vmem:[%s721 + $0x10] sm:$0xff] %v726
              %v728 = vld [vmem:[%s720 + $0x18] sm:$0xff]
              %729 = vst [vmem:[%s721 + $0x18] sm:$0xff] %v728
              %v730 = vld [vmem:[%s720 + $0x20] sm:$0xff]
              %731 = vst [vmem:[%s721 + $0x20] sm:$0xff] %v730
              %v732 = vld [vmem:[%s720 + $0x28] sm:$0xff]
              %733 = vst [vmem:[%s721 + $0x28] sm:$0xff] %v732
              %v734 = vld [vmem:[%s720 + $0x30] sm:$0xff]
              %735 = vst [vmem:[%s721 + $0x30] sm:$0xff] %v734
              %v736 = vld [vmem:[%s720 + $0x38] sm:$0xff]
              %737 = vst [vmem:[%s721 + $0x38] sm:$0xff] %v736
              %v738 = vld [vmem:[%s720 + $0x40] sm:$0xff]
              %739 = vst [vmem:[%s721 + $0x40] sm:$0xff] %v738
              %v740 = vld [vmem:[%s720 + $0x48] sm:$0xff]
              %741 = vst [vmem:[%s721 + $0x48] sm:$0xff] %v740
              %v742 = vld [vmem:[%s720 + $0x50] sm:$0xff]
              %743 = vst [vmem:[%s721 + $0x50] sm:$0xff] %v742
              %v744 = vld [vmem:[%s720 + $0x58] sm:$0xff]
              %745 = vst [vmem:[%s721 + $0x58] sm:$0xff] %v744
              %v746 = vld [vmem:[%s720 + $0x60] sm:$0xff]
              %747 = vst [vmem:[%s721 + $0x60] sm:$0xff] %v746
              %v748 = vld [vmem:[%s720 + $0x68] sm:$0xff]
              %749 = vst [vmem:[%s721 + $0x68] sm:$0xff] %v748
              %v750 = vld [vmem:[%s720 + $0x70] sm:$0xff]
              %751 = vst [vmem:[%s721 + $0x70] sm:$0xff] %v750
              %v752 = vld [vmem:[%s720 + $0x78] sm:$0xff]
              %753 = vst [vmem:[%s721 + $0x78] sm:$0xff] %v752
              %v754 = vld [vmem:[%s720 + $0x80] sm:$0xff]
              %755 = vst [vmem:[%s721 + $0x80] sm:$0xff] %v754
              %v756 = vld [vmem:[%s720 + $0x88] sm:$0xff]
              %757 = vst [vmem:[%s721 + $0x88] sm:$0xff] %v756
              %v758 = vld [vmem:[%s720 + $0x90] sm:$0xff]
              %759 = vst [vmem:[%s721 + $0x90] sm:$0xff] %v758
              %v760 = vld [vmem:[%s720 + $0x98] sm:$0xff]
              %761 = vst [vmem:[%s721 + $0x98] sm:$0xff] %v760
              %v762 = vld [vmem:[%s720 + $0xa0] sm:$0xff]
              %763 = vst [vmem:[%s721 + $0xa0] sm:$0xff] %v762
              %v764 = vld [vmem:[%s720 + $0xa8] sm:$0xff]
              %765 = vst [vmem:[%s721 + $0xa8] sm:$0xff] %v764
              %v766 = vld [vmem:[%s720 + $0xb0] sm:$0xff]
              %767 = vst [vmem:[%s721 + $0xb0] sm:$0xff] %v766
              %v768 = vld [vmem:[%s720 + $0xb8] sm:$0xff]
              %769 = vst [vmem:[%s721 + $0xb8] sm:$0xff] %v768
              %v770 = vld [vmem:[%s720 + $0xc0] sm:$0xff]
              %771 = vst [vmem:[%s721 + $0xc0] sm:$0xff] %v770
              %v772 = vld [vmem:[%s720 + $0xc8] sm:$0xff]
              %773 = vst [vmem:[%s721 + $0xc8] sm:$0xff] %v772
              %v774 = vld [vmem:[%s720 + $0xd0] sm:$0xff]
              %775 = vst [vmem:[%s721 + $0xd0] sm:$0xff] %v774
              %v776 = vld [vmem:[%s720 + $0xd8] sm:$0xff]
              %777 = vst [vmem:[%s721 + $0xd8] sm:$0xff] %v776
              %v778 = vld [vmem:[%s720 + $0xe0] sm:$0xff]
              %779 = vst [vmem:[%s721 + $0xe0] sm:$0xff] %v778
              %v780 = vld [vmem:[%s720 + $0xe8] sm:$0xff]
              %781 = vst [vmem:[%s721 + $0xe8] sm:$0xff] %v780
              %v782 = vld [vmem:[%s720 + $0xf0] sm:$0xff]
              %783 = vst [vmem:[%s721 + $0xf0] sm:$0xff] %v782
              %v784 = vld [vmem:[%s720 + $0xf8] sm:$0xff]
              %785 = vst [vmem:[%s721 + $0xf8] sm:$0xff] %v784
              %v786 = vld [vmem:[%s720 + $0x100] sm:$0xff]
              %787 = vst [vmem:[%s721 + $0x100] sm:$0xff] %v786
              %v788 = vld [vmem:[%s720 + $0x108] sm:$0xff]
              %789 = vst [vmem:[%s721 + $0x108] sm:$0xff] %v788
              %v790 = vld [vmem:[%s720 + $0x110] sm:$0xff]
              %791 = vst [vmem:[%s721 + $0x110] sm:$0xff] %v790
              %v792 = vld [vmem:[%s720 + $0x118] sm:$0xff]
              %793 = vst [vmem:[%s721 + $0x118] sm:$0xff] %v792
              %v794 = vld [vmem:[%s720 + $0x120] sm:$0xff]
              %795 = vst [vmem:[%s721 + $0x120] sm:$0xff] %v794
              %v796 = vld [vmem:[%s720 + $0x128] sm:$0xff]
              %797 = vst [vmem:[%s721 + $0x128] sm:$0xff] %v796
            $region49: #{tpu_custom_call.1} parent=43 // loop_footer
              %s719 = sadd.s32 1, %s715
            $region50: #{tpu_custom_call.1} parent=43 // loop_footer_branch
              %714 = sbr.rel target = $region46
            $region51: #{tpu_custom_call.1} parent=43 // loop_exit
              _
          $region44: #{tpu_custom_call.1} parent=28 // pred_fallthru
            _
          // Predicated region
          $region52: #{tpu_custom_call.1} parent=28 // pred_check
            _
          $region53: #{tpu_custom_call.1} parent=28 // pred_check_branch
            %799 = sbr.rel target = $region55
          $region54: #{tpu_custom_call.1} parent=28 // pred_region
            _
          $region55: #{tpu_custom_call.1} parent=28 // pred_fallthru
            _
        $region29: #{tpu_custom_call.1} parent=24 // pred_fallthru
          _
        // Predicated region
        $region30: #{tpu_custom_call.1} parent=24 // pred_check
          _
        $region31: #{tpu_custom_call.1} parent=24 // pred_check_branch
          %626 = sbr.rel target = $region33
        $region32: #{tpu_custom_call.1} parent=24 // pred_region
          loop: start=0, step=1, limit=1
          $region34: #{tpu_custom_call.1} parent=32 // loop_pre_header
            _
          $region35: #{tpu_custom_call.1} parent=32 // loop_header
            %s629 = sphi 0, %s633
            %p630 = scmp.ge.s32.totalorder %s629, 1
            %s634 = sphi [#allocation5], [#allocation5]
            %s635 = sphi %s3, %s3
          $region36: #{tpu_custom_call.1} parent=32 // loop_header_branch
            %632 = sbr.rel (%p630) target = $region40
          $region37: #{tpu_custom_call.1} parent=32 // loop_body
            %v636 = vld [vmem:[%s634] sm:$0xff]
            %637 = vst [vmem:[%s635] sm:$0xff] %v636
            %v638 = vld [vmem:[%s634 + $0x8] sm:$0xff]
            %639 = vst [vmem:[%s635 + $0x8] sm:$0xff] %v638
            %v640 = vld [vmem:[%s634 + $0x10] sm:$0xff]
            %641 = vst [vmem:[%s635 + $0x10] sm:$0xff] %v640
            %v642 = vld [vmem:[%s634 + $0x18] sm:$0xff]
            %643 = vst [vmem:[%s635 + $0x18] sm:$0xff] %v642
            %v644 = vld [vmem:[%s634 + $0x20] sm:$0xff]
            %645 = vst [vmem:[%s635 + $0x20] sm:$0xff] %v644
            %v646 = vld [vmem:[%s634 + $0x28] sm:$0xff]
            %647 = vst [vmem:[%s635 + $0x28] sm:$0xff] %v646
            %v648 = vld [vmem:[%s634 + $0x30] sm:$0xff]
            %649 = vst [vmem:[%s635 + $0x30] sm:$0xff] %v648
            %v650 = vld [vmem:[%s634 + $0x38] sm:$0xff]
            %651 = vst [vmem:[%s635 + $0x38] sm:$0xff] %v650
            %v652 = vld [vmem:[%s634 + $0x40] sm:$0xff]
            %653 = vst [vmem:[%s635 + $0x40] sm:$0xff] %v652
            %v654 = vld [vmem:[%s634 + $0x48] sm:$0xff]
            %655 = vst [vmem:[%s635 + $0x48] sm:$0xff] %v654
            %v656 = vld [vmem:[%s634 + $0x50] sm:$0xff]
            %657 = vst [vmem:[%s635 + $0x50] sm:$0xff] %v656
            %v658 = vld [vmem:[%s634 + $0x58] sm:$0xff]
            %659 = vst [vmem:[%s635 + $0x58] sm:$0xff] %v658
            %v660 = vld [vmem:[%s634 + $0x60] sm:$0xff]
            %661 = vst [vmem:[%s635 + $0x60] sm:$0xff] %v660
            %v662 = vld [vmem:[%s634 + $0x68] sm:$0xff]
            %663 = vst [vmem:[%s635 + $0x68] sm:$0xff] %v662
            %v664 = vld [vmem:[%s634 + $0x70] sm:$0xff]
            %665 = vst [vmem:[%s635 + $0x70] sm:$0xff] %v664
            %v666 = vld [vmem:[%s634 + $0x78] sm:$0xff]
            %667 = vst [vmem:[%s635 + $0x78] sm:$0xff] %v666
            %v668 = vld [vmem:[%s634 + $0x80] sm:$0xff]
            %669 = vst [vmem:[%s635 + $0x80] sm:$0xff] %v668
            %v670 = vld [vmem:[%s634 + $0x88] sm:$0xff]
            %671 = vst [vmem:[%s635 + $0x88] sm:$0xff] %v670
            %v672 = vld [vmem:[%s634 + $0x90] sm:$0xff]
            %673 = vst [vmem:[%s635 + $0x90] sm:$0xff] %v672
            %v674 = vld [vmem:[%s634 + $0x98] sm:$0xff]
            %675 = vst [vmem:[%s635 + $0x98] sm:$0xff] %v674
            %v676 = vld [vmem:[%s634 + $0xa0] sm:$0xff]
            %677 = vst [vmem:[%s635 + $0xa0] sm:$0xff] %v676
            %v678 = vld [vmem:[%s634 + $0xa8] sm:$0xff]
            %679 = vst [vmem:[%s635 + $0xa8] sm:$0xff] %v678
            %v680 = vld [vmem:[%s634 + $0xb0] sm:$0xff]
            %681 = vst [vmem:[%s635 + $0xb0] sm:$0xff] %v680
            %v682 = vld [vmem:[%s634 + $0xb8] sm:$0xff]
            %683 = vst [vmem:[%s635 + $0xb8] sm:$0xff] %v682
            %v684 = vld [vmem:[%s634 + $0xc0] sm:$0xff]
            %685 = vst [vmem:[%s635 + $0xc0] sm:$0xff] %v684
            %v686 = vld [vmem:[%s634 + $0xc8] sm:$0xff]
            %687 = vst [vmem:[%s635 + $0xc8] sm:$0xff] %v686
            %v688 = vld [vmem:[%s634 + $0xd0] sm:$0xff]
            %689 = vst [vmem:[%s635 + $0xd0] sm:$0xff] %v688
            %v690 = vld [vmem:[%s634 + $0xd8] sm:$0xff]
            %691 = vst [vmem:[%s635 + $0xd8] sm:$0xff] %v690
            %v692 = vld [vmem:[%s634 + $0xe0] sm:$0xff]
            %693 = vst [vmem:[%s635 + $0xe0] sm:$0xff] %v692
            %v694 = vld [vmem:[%s634 + $0xe8] sm:$0xff]
            %695 = vst [vmem:[%s635 + $0xe8] sm:$0xff] %v694
            %v696 = vld [vmem:[%s634 + $0xf0] sm:$0xff]
            %697 = vst [vmem:[%s635 + $0xf0] sm:$0xff] %v696
            %v698 = vld [vmem:[%s634 + $0xf8] sm:$0xff]
            %699 = vst [vmem:[%s635 + $0xf8] sm:$0xff] %v698
            %v700 = vld [vmem:[%s634 + $0x100] sm:$0xff]
            %701 = vst [vmem:[%s635 + $0x100] sm:$0xff] %v700
            %v702 = vld [vmem:[%s634 + $0x108] sm:$0xff]
            %703 = vst [vmem:[%s635 + $0x108] sm:$0xff] %v702
            %v704 = vld [vmem:[%s634 + $0x110] sm:$0xff]
            %705 = vst [vmem:[%s635 + $0x110] sm:$0xff] %v704
            %v706 = vld [vmem:[%s634 + $0x118] sm:$0xff]
            %707 = vst [vmem:[%s635 + $0x118] sm:$0xff] %v706
            %v708 = vld [vmem:[%s634 + $0x120] sm:$0xff]
            %709 = vst [vmem:[%s635 + $0x120] sm:$0xff] %v708
            %v710 = vld [vmem:[%s634 + $0x128] sm:$0xff]
            %711 = vst [vmem:[%s635 + $0x128] sm:$0xff] %v710
          $region38: #{tpu_custom_call.1} parent=32 // loop_footer
            %s633 = sadd.s32 1, %s629
          $region39: #{tpu_custom_call.1} parent=32 // loop_footer_branch
            %628 = sbr.rel target = $region35
          $region40: #{tpu_custom_call.1} parent=32 // loop_exit
            _
        $region33: #{tpu_custom_call.1} parent=24 // pred_fallthru
          _
      $region25: #{tpu_custom_call.1} parent=20 // pred_fallthru
        _
      %800 = vnop
    $region21: #{tpu_custom_call.1} parent=1 // pred_fallthru
      _
    // Predicated region
    $region56: #{tpu_custom_call.1} parent=1 // pred_check
      _
    $region57: #{tpu_custom_call.1} parent=1 // pred_check_branch
      %802 = sbr.rel (0) target = $region59
    $region58: #{tpu_custom_call.1} parent=1 // pred_region
      _
    $region59: #{tpu_custom_call.1} parent=1 // pred_fallthru
      _
    %803 = vsyncpa [#allocation4], 1

</llo_original>
